<compile_context>
chip_gen: v6e
topology: v6e:2x2x1
jax: 0.10.0
libtpu: 0.0.40
codegen_flags: <defaults>
</compile_context>

<pallas_src>
import math
from functools import partial

import jax
import jax.numpy as jnp
from jax.experimental import pallas as pl
from jax.experimental.pallas import tpu as pltpu


def fused_kernel(x_ref, w_ref, o_ref):
    """x_ref: (C, H, W) input.
    w_ref: (N, C*W + 1) fused weight; last column is the fused bias.
    o_ref: (N, H) output, already in the permuted (c_out*O, H) layout.

    Computes o[n, h] = tanh( sum_{c,w} w[n, c*W + w] * x[c, h, w] + w[n, K] ).
    """
    C, H, W = x_ref.shape
    N, Kp1 = w_ref.shape
    K = Kp1 - 1

    w = w_ref[...]
    acc = jnp.zeros((N, H), jnp.float32)
    # Per-input-channel NT matmul: (N, W) x (H, W)^T -> (N, H).  C = 2, unrolled.
    for c in range(C):
        acc = acc + jax.lax.dot_general(
            w[:, c * W:(c + 1) * W], x_ref[c],
            dimension_numbers=(((1,), (1,)), ((), ())),
            preferred_element_type=jnp.float32)
    # fused-bias column broadcasts over the H lane axis
    o_ref[...] = jnp.tanh(acc + w[:, K:Kp1])


def fuse_params(conv_w, conv_b, lin_w, lin_b):
    """Algebraically fuse conv(1x1) -> linear into a single affine map.

    Runs ONCE (outside jit / the hot path).  Returns w_aug of shape
    (Co*O, C*W + 1): row n = i*O + j, columns [0:K) = fused weight (c-major,
    w-minor), column K = fused bias.
    """
    Co, C = conv_w.shape
    O, W = lin_w.shape
    hp = jax.lax.Precision.HIGHEST

    # conv as matmul:   A[(c,w), (i,w')] = conv_w[i, c] * delta(w, w')
    A = jnp.kron(conv_w.T, jnp.eye(W, dtype=conv_w.dtype))            # (C*W, Co*W)
    bc_row = jnp.repeat(conv_b, W).reshape(1, Co * W)
    # linear as block-diag matmul:  B[(i,w), (i',j)] = delta(i,i') * lin_w[j, w]
    B = jnp.kron(jnp.eye(Co, dtype=lin_w.dtype), lin_w.T)             # (Co*W, Co*O)
    bl_row = jnp.tile(lin_b, Co).reshape(1, Co * O)

    W_fused = jnp.dot(A, B, precision=hp)                             # (C*W, Co*O)
    b_fused = jnp.dot(bc_row, B, precision=hp) + bl_row               # (1,  Co*O)
    # kernel consumes the transposed form with bias as the last column
    return jnp.concatenate([W_fused.T, b_fused.T], axis=1)            # (Co*O, C*W+1)


@partial(jax.jit, static_argnames=("co", "o"))
def model_forward(x_chw, w_aug, *, co, o):
    """x_chw: (C, H, W) f32, w_aug: (Co*O, C*W+1) f32 (precomputed once).
    Returns tanh(linear(conv(x)).permute(0,2,1)) with shape (Co, O, H)."""
    C, H, W = x_chw.shape
    N = w_aug.shape[0]

    out_nh = pl.pallas_call(
        fused_kernel,
        out_shape=jax.ShapeDtypeStruct((N, H), jnp.float32),
        in_specs=[
            pl.BlockSpec(memory_space=pltpu.MemorySpace.VMEM),
            pl.BlockSpec(memory_space=pltpu.MemorySpace.VMEM),
        ],
        out_specs=pl.BlockSpec(memory_space=pltpu.MemorySpace.VMEM),
    )(x_chw, w_aug)

    # out_nh[i*O + j, h] == v4[i, j, h]  ->  permute is a free reshape
    return out_nh.reshape(co, o, H)


if __name__ == "__main__":
    C_in, C_out, H, W, O = 2, 2, 8, 2, 2

    key = jax.random.PRNGKey(0)
    kx, k1, k2, k3, k4 = jax.random.split(key, 5)

    # deterministic PyTorch-style U(-1/sqrt(fan_in), 1/sqrt(fan_in)) init
    def uinit(k, shape, fan_in):
        b = 1.0 / math.sqrt(fan_in)
        return jax.random.uniform(k, shape, jnp.float32, -b, b)

    # Conv2d(2, 2, 1): weight (Co, C, 1, 1) -> squeeze to (Co, C); fan_in = C*1*1
    conv_w = uinit(k1, (C_out, C_in, 1, 1), C_in).reshape(C_out, C_in)
    conv_b = uinit(k2, (C_out,), C_in)
    # Linear(2, 2): weight (O, W); fan_in = W
    lin_w = uinit(k3, (O, W), W)
    lin_b = uinit(k4, (O,), W)

    # unbatched CHW input (Conv2d 3-D path); W must equal Linear in_features
    x1 = jax.random.normal(kx, (C_in, H, W), jnp.float32)

    # hoisted out of the per-call path: fuse weights ONCE
    w_aug = jax.block_until_ready(fuse_params(conv_w, conv_b, lin_w, lin_b))

    out = model_forward(x1, w_aug, co=C_out, o=O)
    out = jax.block_until_ready(out)

    # pure-JAX reference of the PyTorch forward
    v3 = jnp.einsum("oc,chw->ohw", conv_w, x1,
                    precision=jax.lax.Precision.HIGHEST) + conv_b[:, None, None]
    v1 = jnp.einsum("chw,ow->cho", v3, lin_w,
                    precision=jax.lax.Precision.HIGHEST) + lin_b
    ref = jnp.tanh(jnp.transpose(v1, (0, 2, 1)))

    assert out.shape == (C_out, O, H)
    assert jnp.allclose(out, ref, rtol=1e-3, atol=1e-3), "kernel/reference mismatch"
    print("KERNEL_OK")
</pallas_src>

<mosaic_0001>
module attributes {stable_mosaic.version = 11 : i64} {
  func.func @fused_kernel(%arg0: memref<2x8x2xf32, #tpu.memory_space<vmem>>, %arg1: memref<4x5xf32, #tpu.memory_space<vmem>>, %arg2: memref<4x8xf32, #tpu.memory_space<vmem>>) attributes {dimension_semantics = [], scalar_prefetch = 0 : i64, scratch_operands = 0 : i64, tpu.core_type = #tpu.core_type<tc>} {
    %c0 = arith.constant 0 : index
    %c0_0 = arith.constant 0 : index
    %0 = vector.load %arg1[%c0, %c0_0] : memref<4x5xf32, #tpu.memory_space<vmem>>, vector<4x5xf32>
    %cst = arith.constant 0.000000e+00 : f32
    %1 = vector.broadcast %cst : f32 to vector<4x8xf32>
    %2 = vector.extract_strided_slice %0 {offsets = [0, 0], sizes = [4, 2], strides = [1, 1]} : vector<4x5xf32> to vector<4x2xf32>
    %c0_1 = arith.constant 0 : index
    %c0_2 = arith.constant 0 : index
    %c0_3 = arith.constant 0 : index
    %3 = vector.load %arg0[%c0_1, %c0_2, %c0_3] : memref<2x8x2xf32, #tpu.memory_space<vmem>>, vector<1x8x2xf32>
    %4 = vector.shape_cast %3 : vector<1x8x2xf32> to vector<8x2xf32>
    %cst_4 = arith.constant dense<0.000000e+00> : vector<4x8xf32>
    %5 = tpu.matmul %2, %4, %cst_4 {dimension_numbers = #tpu.dot_dimension_numbers<[1], [1], [0], [0], [0, 0, 1, 0], [], []>} : vector<4x2xf32>, vector<8x2xf32>, vector<4x8xf32> -> vector<4x8xf32>
    %6 = arith.addf %1, %5 : vector<4x8xf32>
    %7 = vector.extract_strided_slice %0 {offsets = [0, 2], sizes = [4, 2], strides = [1, 1]} : vector<4x5xf32> to vector<4x2xf32>
    %c1 = arith.constant 1 : index
    %c0_5 = arith.constant 0 : index
    %c0_6 = arith.constant 0 : index
    %8 = vector.load %arg0[%c1, %c0_5, %c0_6] : memref<2x8x2xf32, #tpu.memory_space<vmem>>, vector<1x8x2xf32>
    %9 = vector.shape_cast %8 : vector<1x8x2xf32> to vector<8x2xf32>
    %cst_7 = arith.constant dense<0.000000e+00> : vector<4x8xf32>
    %10 = tpu.matmul %7, %9, %cst_7 {dimension_numbers = #tpu.dot_dimension_numbers<[1], [1], [0], [0], [0, 0, 1, 0], [], []>} : vector<4x2xf32>, vector<8x2xf32>, vector<4x8xf32> -> vector<4x8xf32>
    %11 = arith.addf %6, %10 : vector<4x8xf32>
    %12 = vector.extract_strided_slice %0 {offsets = [0, 4], sizes = [4, 1], strides = [1, 1]} : vector<4x5xf32> to vector<4x1xf32>
    %13 = vector.broadcast %12 : vector<4x1xf32> to vector<4x8xf32>
    %14 = arith.addf %11, %13 : vector<4x8xf32>
    %15 = math.tanh %14 : vector<4x8xf32>
    %c0_8 = arith.constant 0 : index
    %c0_9 = arith.constant 0 : index
    %16 = vector.load %arg2[%c0_8, %c0_9] : memref<4x8xf32, #tpu.memory_space<vmem>>, vector<4x8xf32>
    tpu.vector_store %arg2[%c0_8, %c0_9], %15 {strides = array<i32>} : memref<4x8xf32, #tpu.memory_space<vmem>>, vector<4x8xf32>,
    return
  }
}

</mosaic_0001>

<llo_original>
// kernel: model_forward.1
$region0: #{model_forward.1}
  #allocation0 [shape = 'u32[]', space=smem, size = 0x4, offset = 0x4, fixed_abs, tag = 'smem constant byte address 0x4 - core index']
  #allocation1 [shape = 'u32[144,128]{1,0:T(1,128)}', space=vmem, size = 0x12000, scoped, tag = 'internal scratch']
  %s0 = inlined_call_operand.vmem [shape: f32[2,8,2], index: 0, kind: input, shape index: {}]
  %s1 = inlined_call_operand.vmem [shape: f32[4,5], index: 1, kind: input, shape index: {}]
  %s2 = inlined_call_operand.hbm [shape: f32[4,8], index: 2, kind: output, shape index: {}]
  %s3 = sld [smem:[#allocation0]]
  $region18: #{model_forward.1} parent=0
    _
  %s5 = ssub.s32 1, %s3
  %s6 = scalar_select 0, %s5, %s3
  $region1: #{model_forward.1} parent=0
    #allocation2 [shape = 'u8[2048]{0}', space=vmem, size = 0x800, scoped, tag = 'output window, operand 0, single buffered']
    #allocation3 [shape = 's32[1]{0}', space=sflag, size = 0x4, scoped, tag = 'scoped memory for model_forward.1']
    %7 = vsyncpa [#allocation3], 0
    // Predicated region
    $region2: #{model_forward.1} parent=1 // pred_check
      _
    $region3: #{model_forward.1} parent=1 // pred_check_branch
      %9 = sbr.rel (0) target = $region5
    $region4: #{model_forward.1} parent=1 // pred_region
      _
    $region5: #{model_forward.1} parent=1 // pred_fallthru
      _
    // Predicated region
    $region6: #{model_forward.1} parent=1 // pred_check
      _
    $region7: #{model_forward.1} parent=1 // pred_check_branch
      %11 = sbr.rel (0) target = $region9
    $region8: #{model_forward.1} parent=1 // pred_region
      _
    $region9: #{model_forward.1} parent=1 // pred_fallthru
      _
    %v12 = vld [vmem:[%s1] sm:$0xf]
    %v13 = vld [vmem:[%s0] sm:$0xff]
    %s14 = scalar_lea.vmem %s0, 8
    %v15 = vld [vmem:[%s14] sm:$0xff]
    %17 = vrot.lane.b32.xlu0 %v12, 126
    %v18 = vpop.permute.xlu0 %17
    %vm19 = vcmask 15360
    %v20 = vsel %vm19, %v18, 0
    %v23 = vsel %vm19, %v15, 0
    %25 = vmatprep.subr.mxu0 0.0
    %26 = vmatpush1.xpose.msra.mxu0 0.0
    %27 = vmatprep.subr.mxu0 0.0
    %28 = vmatpush1.xpose.msra.mxu0 0.0
    %29 = vmatprep.subr.mxu0 0.0
    %30 = vmatpush1.xpose.msra.mxu0 0.0
    %31 = vmatprep.subr.mxu0 0.0
    %32 = vmatpush1.xpose.msra.mxu0 0.0
    %33 = vmatprep.subr.mxu0 0.0
    %34 = vmatpush1.xpose.msra.mxu0 0.0
    %35 = vmatprep.subr.mxu0 0.0
    %36 = vmatpush1.xpose.msra.mxu0 0.0
    %37 = vmatprep.subr.mxu0 0.0
    %38 = vmatpush1.xpose.msra.mxu0 0.0
    %39 = vmatprep.subr.mxu0 0.0
    %40 = vmatpush1.xpose.msra.mxu0 0.0
    %41 = vmatprep.subr.mxu0 0.0
    %42 = vmatpush1.xpose.msra.mxu0 0.0
    %43 = vmatprep.subr.mxu0 0.0
    %44 = vmatpush1.xpose.msra.mxu0 0.0
    %45 = vmatprep.subr.mxu0 0.0
    %46 = vmatpush1.xpose.msra.mxu0 0.0
    %47 = vmatprep.subr.mxu0 0.0
    %48 = vmatpush1.xpose.msra.mxu0 0.0
    %49 = vmatprep.subr.mxu0 0.0
    %50 = vmatpush1.xpose.msra.mxu0 0.0
    %51 = vmatprep.subr.mxu0 0.0
    %52 = vmatpush1.xpose.msra.mxu0 0.0
    %53 = vmatprep.subr.mxu0 0.0
    %54 = vmatpush1.xpose.msra.mxu0 0.0
    %55 = vmatprep.subr.mxu0 0.0
    %56 = vmatpush1.xpose.msra.mxu0 %v23
    %57 = vmatprep.subr.mxu0 0.0
    %58 = vmatpush2.xpose.msra.mxu0 0.0
    %59 = vmatprep.subr.mxu0 0.0
    %60 = vmatpush2.xpose.msra.mxu0 0.0
    %61 = vmatprep.subr.mxu0 0.0
    %62 = vmatpush2.xpose.msra.mxu0 0.0
    %63 = vmatprep.subr.mxu0 0.0
    %64 = vmatpush2.xpose.msra.mxu0 0.0
    %65 = vmatprep.subr.mxu0 0.0
    %66 = vmatpush2.xpose.msra.mxu0 0.0
    %67 = vmatprep.subr.mxu0 0.0
    %68 = vmatpush2.xpose.msra.mxu0 0.0
    %69 = vmatprep.subr.mxu0 0.0
    %70 = vmatpush2.xpose.msra.mxu0 0.0
    %71 = vmatprep.subr.mxu0 0.0
    %72 = vmatpush2.xpose.msra.mxu0 0.0
    %73 = vmatprep.subr.mxu0 0.0
    %74 = vmatpush2.xpose.msra.mxu0 0.0
    %75 = vmatprep.subr.mxu0 0.0
    %76 = vmatpush2.xpose.msra.mxu0 0.0
    %77 = vmatprep.subr.mxu0 0.0
    %78 = vmatpush2.xpose.msra.mxu0 0.0
    %79 = vmatprep.subr.mxu0 0.0
    %80 = vmatpush2.xpose.msra.mxu0 0.0
    %81 = vmatprep.subr.mxu0 0.0
    %82 = vmatpush2.xpose.msra.mxu0 0.0
    %83 = vmatprep.subr.mxu0 0.0
    %84 = vmatpush2.xpose.msra.mxu0 0.0
    %85 = vmatprep.subr.mxu0 0.0
    %86 = vmatpush2.xpose.msra.mxu0 0.0
    %87 = vmatprep.subr.mxu0 0.0
    %88 = vmatpush2.xpose.msra.mxu0 0.0
    %89 = vmatprep.mubr.f32.mxu0 0.0
    %90 = vmatmul.mubr.f32.gmra.mxu0 %v20
    %v91 = vpop.f32.mrf.mxu0
    %v92 = vadd.f32 0.0, %v91
    %v93 = vpop.f32.mrf.mxu0
    %94 = vdwg.mxu0
    %v95 = vsel %vm19, %v12, 0
    %v98 = vsel %vm19, %v13, 0
    %100 = vmatprep.subr.mxu0 0.0
    %101 = vmatpush1.xpose.msra.mxu0 0.0
    %102 = vmatprep.subr.mxu0 0.0
    %103 = vmatpush1.xpose.msra.mxu0 0.0
    %104 = vmatprep.subr.mxu0 0.0
    %105 = vmatpush1.xpose.msra.mxu0 0.0
    %106 = vmatprep.subr.mxu0 0.0
    %107 = vmatpush1.xpose.msra.mxu0 0.0
    %108 = vmatprep.subr.mxu0 0.0
    %109 = vmatpush1.xpose.msra.mxu0 0.0
    %110 = vmatprep.subr.mxu0 0.0
    %111 = vmatpush1.xpose.msra.mxu0 0.0
    %112 = vmatprep.subr.mxu0 0.0
    %113 = vmatpush1.xpose.msra.mxu0 0.0
    %114 = vmatprep.subr.mxu0 0.0
    %115 = vmatpush1.xpose.msra.mxu0 0.0
    %116 = vmatprep.subr.mxu0 0.0
    %117 = vmatpush1.xpose.msra.mxu0 0.0
    %118 = vmatprep.subr.mxu0 0.0
    %119 = vmatpush1.xpose.msra.mxu0 0.0
    %120 = vmatprep.subr.mxu0 0.0
    %121 = vmatpush1.xpose.msra.mxu0 0.0
    %122 = vmatprep.subr.mxu0 0.0
    %123 = vmatpush1.xpose.msra.mxu0 0.0
    %124 = vmatprep.subr.mxu0 0.0
    %125 = vmatpush1.xpose.msra.mxu0 0.0
    %126 = vmatprep.subr.mxu0 0.0
    %127 = vmatpush1.xpose.msra.mxu0 0.0
    %128 = vmatprep.subr.mxu0 0.0
    %129 = vmatpush1.xpose.msra.mxu0 0.0
    %130 = vmatprep.subr.mxu0 0.0
    %131 = vmatpush1.xpose.msra.mxu0 %v98
    %132 = vmatprep.subr.mxu0 0.0
    %133 = vmatpush2.xpose.msra.mxu0 0.0
    %134 = vmatprep.subr.mxu0 0.0
    %135 = vmatpush2.xpose.msra.mxu0 0.0
    %136 = vmatprep.subr.mxu0 0.0
    %137 = vmatpush2.xpose.msra.mxu0 0.0
    %138 = vmatprep.subr.mxu0 0.0
    %139 = vmatpush2.xpose.msra.mxu0 0.0
    %140 = vmatprep.subr.mxu0 0.0
    %141 = vmatpush2.xpose.msra.mxu0 0.0
    %142 = vmatprep.subr.mxu0 0.0
    %143 = vmatpush2.xpose.msra.mxu0 0.0
    %144 = vmatprep.subr.mxu0 0.0
    %145 = vmatpush2.xpose.msra.mxu0 0.0
    %146 = vmatprep.subr.mxu0 0.0
    %147 = vmatpush2.xpose.msra.mxu0 0.0
    %148 = vmatprep.subr.mxu0 0.0
    %149 = vmatpush2.xpose.msra.mxu0 0.0
    %150 = vmatprep.subr.mxu0 0.0
    %151 = vmatpush2.xpose.msra.mxu0 0.0
    %152 = vmatprep.subr.mxu0 0.0
    %153 = vmatpush2.xpose.msra.mxu0 0.0
    %154 = vmatprep.subr.mxu0 0.0
    %155 = vmatpush2.xpose.msra.mxu0 0.0
    %156 = vmatprep.subr.mxu0 0.0
    %157 = vmatpush2.xpose.msra.mxu0 0.0
    %158 = vmatprep.subr.mxu0 0.0
    %159 = vmatpush2.xpose.msra.mxu0 0.0
    %160 = vmatprep.subr.mxu0 0.0
    %161 = vmatpush2.xpose.msra.mxu0 0.0
    %162 = vmatprep.subr.mxu0 0.0
    %163 = vmatpush2.xpose.msra.mxu0 0.0
    %164 = vmatprep.mubr.f32.mxu0 0.0
    %165 = vmatmul.mubr.f32.gmra.mxu0 %v95
    %v166 = vpop.f32.mrf.mxu0
    %v167 = vadd.f32 %v92, %v166
    %v168 = vpop.f32.mrf.mxu0
    %169 = vdwg.mxu0
    %170 = vset.pattern.permute.xlu0 4
    %171 = vperm.xlu0 %170, %v12
    %v172 = vpop.permute.xlu0 %171
    %v174 = vadd.f32 %v167, %v172
    %v175 = vtanh.pop %v174
    %vm176 = vcmask 60416
    %177 = vst.msk [vmem:[#allocation2] sm:$0xf] %vm176, %v175
    // Predicated region
    $region10: #{model_forward.1} parent=1 // pred_check
      _
    $region11: #{model_forward.1} parent=1 // pred_check_branch
      %179 = sbr.rel (0) target = $region13
    $region12: #{model_forward.1} parent=1 // pred_region
      %s181 = ssub.s32 64, 64
      %182 = vsyncadd [#allocation3], %s181
      %s184 = sshll.u32 [#allocation2], 4
      %s185 = int_to_ptr.vmem [resolvable:$true] %s184
      %187 = dma.vmem_to_hbm [thread:$0]  %s185, 64, %s2, [#allocation3]
    $region13: #{model_forward.1} parent=1 // pred_fallthru
      _
    // Predicated region
    $region14: #{model_forward.1} parent=1 // pred_check
      _
    $region15: #{model_forward.1} parent=1 // pred_check_branch
      %189 = sbr.rel (0) target = $region17
    $region16: #{model_forward.1} parent=1 // pred_region
      %190 = dma.done [#allocation3], 64
    $region17: #{model_forward.1} parent=1 // pred_fallthru
      _
    %191 = vsyncpa [#allocation3], 1

</llo_original>
